<compile_context>
chip_gen: v6e
topology: v6e:2x2x1
jax: 0.10.0
libtpu: 0.0.40
codegen_flags: <defaults>
</compile_context>

<pallas_src>
import jax
import jax.numpy as jnp
from jax.experimental import pallas as pl
from jax.experimental.pallas import tpu as pltpu

_C3 = 4  # v3 = v1[:, 0:4]

# Below this output-payload size the custom-call + DMA-issue latency dominates
# the <1 us HBM roofline on every TPU generation -> let XLA emit the copy.
_PALLAS_MIN_BYTES = 1 << 20  # 1 MiB


def _concat_dma_kernel(x1_ref, x2_ref, o_ref, copy_sem):
    c1 = x1_ref.shape[0]
    c2 = x2_ref.shape[0]

    # out[0 : c1]            = x1
    cp1 = pltpu.make_async_copy(x1_ref, o_ref.at[pl.ds(0, c1)], copy_sem.at[0])
    # out[c1 : c1+c2]        = x2
    cp2 = pltpu.make_async_copy(x2_ref, o_ref.at[pl.ds(c1, c2)], copy_sem.at[1])
    # out[c1+c2 : c1+c2+4]   = x1[0:4]   (v3)
    # Sourced from x1 in HBM on purpose: sourcing from o_ref[0:4] would
    # serialize this copy behind cp1 (one extra DMA latency) to save ~32 KiB of
    # padded HBM read -- keep all three copies independent and overlapped.
    cp3 = pltpu.make_async_copy(
        x1_ref.at[pl.ds(0, _C3)], o_ref.at[pl.ds(c1 + c2, _C3)], copy_sem.at[2]
    )

    cp1.start()
    cp2.start()
    cp3.start()
    cp1.wait()
    cp2.wait()
    cp3.wait()


def model_forward_pallas(x1, x2):
    """Pallas DMA path.  x1: (1, C1, H, W), x2: (1, C2, H, W) -> (1, C1+C2+4, H, W)."""
    n, c1, h, w = x1.shape
    n2, c2, h2, w2 = x2.shape
    # Load-bearing: folding a batch dim > 1 into the leading axis would
    # interleave batches and corrupt the concat order.
    assert n == 1 and n2 == 1, "synthetic module uses batch 1"
    assert (h, w) == (h2, w2) and x1.dtype == x2.dtype
    assert c1 >= _C3
    c_out = c1 + c2 + _C3

    # Drop the unit batch dim so the concat axis is the leading axis of a 3-D
    # array, i.e. above the (8,128)-tiled minor dims -> arbitrary channel
    # offsets are DMA-friendly (no tile-phase issues).
    x1_3d = x1.reshape(c1, h, w)
    x2_3d = x2.reshape(c2, h, w)

    out_3d = pl.pallas_call(
        _concat_dma_kernel,
        out_shape=jax.ShapeDtypeStruct((c_out, h, w), x1.dtype),
        in_specs=[
            pl.BlockSpec(memory_space=pl.ANY),  # x1 stays in HBM
            pl.BlockSpec(memory_space=pl.ANY),  # x2 stays in HBM
        ],
        out_specs=pl.BlockSpec(memory_space=pl.ANY),  # written only via DMA
        scratch_shapes=[pltpu.SemaphoreType.DMA((3,))],
    )(x1_3d, x2_3d)

    return out_3d.reshape(n, c_out, h, w)


def model_forward(x1, x2):
    """Size-gated forward (perf feedback #1): tiny payloads skip the custom call."""
    n, c1, h, w = x1.shape
    c_out = c1 + x2.shape[1] + _C3
    out_bytes = n * c_out * h * w * jnp.dtype(x1.dtype).itemsize
    if out_bytes < _PALLAS_MIN_BYTES:
        # Launch-latency bound regime: one fused XLA copy beats any kernel.
        return jnp.concatenate([x1, x2, x1[:, 0:_C3]], axis=1)
    return model_forward_pallas(x1, x2)


if __name__ == "__main__":
    key = jax.random.PRNGKey(0)
    k1, k2 = jax.random.split(key)
    x1 = jax.random.normal(k1, (1, 20, 10, 10), dtype=jnp.float32)
    x2 = jax.random.normal(k2, (1, 50, 10, 10), dtype=jnp.float32)

    # Exercise the Pallas DMA kernel explicitly once.
    out = model_forward_pallas(x1, x2)
    jax.block_until_ready(out)

    # Reference in plain JAX (exact: the op is pure data movement).
    v1 = jnp.concatenate([x1, x2], axis=1)
    v4 = jnp.concatenate([v1, v1[:, 0:4]], axis=1)
    assert out.shape == (1, 74, 10, 10), out.shape
    assert jnp.array_equal(out, v4), "pallas path mismatch vs reference"

    # The size-gated public wrapper must agree as well.
    out_gated = model_forward(x1, x2)
    jax.block_until_ready(out_gated)
    assert jnp.array_equal(out_gated, v4), "gated path mismatch vs reference"

    print("KERNEL_OK")
</pallas_src>

<mosaic_0001>
module attributes {stable_mosaic.version = 11 : i64} {
  func.func @_concat_dma_kernel(%arg0: memref<20x10x10xf32, #tpu.memory_space<any>>, %arg1: memref<50x10x10xf32, #tpu.memory_space<any>>, %arg2: memref<74x10x10xf32, #tpu.memory_space<any>>, %arg3: memref<3x!tpu.dma_semaphore, #tpu.memory_space<semaphore_mem>>) attributes {dimension_semantics = [], scalar_prefetch = 0 : i64, scratch_operands = 1 : i64, tpu.core_type = #tpu.core_type<tc>} {
    %c0_i32 = arith.constant 0 : i32
    %c0_i32_0 = arith.constant 0 : i32
    %c0_i32_1 = arith.constant 0 : i32
    %c0_i32_2 = arith.constant 0 : i32
    %0 = tpu.memref_slice %arg2[%c0_i32_0, %c0_i32_1, %c0_i32_2] : memref<74x10x10xf32, #tpu.memory_space<any>> -> memref<20x10x10xf32, #tpu.memory_space<any>>
    %1 = tpu.memref_slice %arg3[%c0_i32] : memref<3x!tpu.dma_semaphore, #tpu.memory_space<semaphore_mem>> -> memref<1x!tpu.dma_semaphore, #tpu.memory_space<semaphore_mem>>
    %2 = tpu.memref_squeeze %1 : memref<1x!tpu.dma_semaphore, #tpu.memory_space<semaphore_mem>> -> memref<!tpu.dma_semaphore, #tpu.memory_space<semaphore_mem>>
    tpu.enqueue_dma source(%arg0 : memref<20x10x10xf32, #tpu.memory_space<any>>) target(%0 : memref<20x10x10xf32, #tpu.memory_space<any>>) target_semaphore(%2 : memref<!tpu.dma_semaphore, #tpu.memory_space<semaphore_mem>>)
    %c1_i32 = arith.constant 1 : i32
    %c20_i32 = arith.constant 20 : i32
    %c0_i32_3 = arith.constant 0 : i32
    %c0_i32_4 = arith.constant 0 : i32
    %3 = tpu.memref_slice %arg2[%c20_i32, %c0_i32_3, %c0_i32_4] : memref<74x10x10xf32, #tpu.memory_space<any>> -> memref<50x10x10xf32, #tpu.memory_space<any>>
    %4 = tpu.memref_slice %arg3[%c1_i32] : memref<3x!tpu.dma_semaphore, #tpu.memory_space<semaphore_mem>> -> memref<1x!tpu.dma_semaphore, #tpu.memory_space<semaphore_mem>>
    %5 = tpu.memref_squeeze %4 : memref<1x!tpu.dma_semaphore, #tpu.memory_space<semaphore_mem>> -> memref<!tpu.dma_semaphore, #tpu.memory_space<semaphore_mem>>
    tpu.enqueue_dma source(%arg1 : memref<50x10x10xf32, #tpu.memory_space<any>>) target(%3 : memref<50x10x10xf32, #tpu.memory_space<any>>) target_semaphore(%5 : memref<!tpu.dma_semaphore, #tpu.memory_space<semaphore_mem>>)
    %c2_i32 = arith.constant 2 : i32
    %c0_i32_5 = arith.constant 0 : i32
    %c0_i32_6 = arith.constant 0 : i32
    %c0_i32_7 = arith.constant 0 : i32
    %6 = tpu.memref_slice %arg0[%c0_i32_5, %c0_i32_6, %c0_i32_7] : memref<20x10x10xf32, #tpu.memory_space<any>> -> memref<4x10x10xf32, #tpu.memory_space<any>>
    %c70_i32 = arith.constant 70 : i32
    %c0_i32_8 = arith.constant 0 : i32
    %c0_i32_9 = arith.constant 0 : i32
    %7 = tpu.memref_slice %arg2[%c70_i32, %c0_i32_8, %c0_i32_9] : memref<74x10x10xf32, #tpu.memory_space<any>> -> memref<4x10x10xf32, #tpu.memory_space<any>>
    %8 = tpu.memref_slice %arg3[%c2_i32] : memref<3x!tpu.dma_semaphore, #tpu.memory_space<semaphore_mem>> -> memref<1x!tpu.dma_semaphore, #tpu.memory_space<semaphore_mem>>
    %9 = tpu.memref_squeeze %8 : memref<1x!tpu.dma_semaphore, #tpu.memory_space<semaphore_mem>> -> memref<!tpu.dma_semaphore, #tpu.memory_space<semaphore_mem>>
    tpu.enqueue_dma source(%6 : memref<4x10x10xf32, #tpu.memory_space<any>>) target(%7 : memref<4x10x10xf32, #tpu.memory_space<any>>) target_semaphore(%9 : memref<!tpu.dma_semaphore, #tpu.memory_space<semaphore_mem>>)
    %c0_i32_10 = arith.constant 0 : i32
    %c0_i32_11 = arith.constant 0 : i32
    %c0_i32_12 = arith.constant 0 : i32
    %c0_i32_13 = arith.constant 0 : i32
    %10 = tpu.memref_slice %arg2[%c0_i32_11, %c0_i32_12, %c0_i32_13] : memref<74x10x10xf32, #tpu.memory_space<any>> -> memref<20x10x10xf32, #tpu.memory_space<any>>
    %11 = tpu.memref_slice %arg3[%c0_i32_10] : memref<3x!tpu.dma_semaphore, #tpu.memory_space<semaphore_mem>> -> memref<1x!tpu.dma_semaphore, #tpu.memory_space<semaphore_mem>>
    %12 = tpu.memref_squeeze %11 : memref<1x!tpu.dma_semaphore, #tpu.memory_space<semaphore_mem>> -> memref<!tpu.dma_semaphore, #tpu.memory_space<semaphore_mem>>
    tpu.wait_dma2 semaphore(%12 : memref<!tpu.dma_semaphore, #tpu.memory_space<semaphore_mem>>) src(%arg0 : memref<20x10x10xf32, #tpu.memory_space<any>>) dst(%10 : memref<20x10x10xf32, #tpu.memory_space<any>>)
    %c1_i32_14 = arith.constant 1 : i32
    %c20_i32_15 = arith.constant 20 : i32
    %c0_i32_16 = arith.constant 0 : i32
    %c0_i32_17 = arith.constant 0 : i32
    %13 = tpu.memref_slice %arg2[%c20_i32_15, %c0_i32_16, %c0_i32_17] : memref<74x10x10xf32, #tpu.memory_space<any>> -> memref<50x10x10xf32, #tpu.memory_space<any>>
    %14 = tpu.memref_slice %arg3[%c1_i32_14] : memref<3x!tpu.dma_semaphore, #tpu.memory_space<semaphore_mem>> -> memref<1x!tpu.dma_semaphore, #tpu.memory_space<semaphore_mem>>
    %15 = tpu.memref_squeeze %14 : memref<1x!tpu.dma_semaphore, #tpu.memory_space<semaphore_mem>> -> memref<!tpu.dma_semaphore, #tpu.memory_space<semaphore_mem>>
    tpu.wait_dma2 semaphore(%15 : memref<!tpu.dma_semaphore, #tpu.memory_space<semaphore_mem>>) src(%arg1 : memref<50x10x10xf32, #tpu.memory_space<any>>) dst(%13 : memref<50x10x10xf32, #tpu.memory_space<any>>)
    %c2_i32_18 = arith.constant 2 : i32
    %c0_i32_19 = arith.constant 0 : i32
    %c0_i32_20 = arith.constant 0 : i32
    %c0_i32_21 = arith.constant 0 : i32
    %16 = tpu.memref_slice %arg0[%c0_i32_19, %c0_i32_20, %c0_i32_21] : memref<20x10x10xf32, #tpu.memory_space<any>> -> memref<4x10x10xf32, #tpu.memory_space<any>>
    %c70_i32_22 = arith.constant 70 : i32
    %c0_i32_23 = arith.constant 0 : i32
    %c0_i32_24 = arith.constant 0 : i32
    %17 = tpu.memref_slice %arg2[%c70_i32_22, %c0_i32_23, %c0_i32_24] : memref<74x10x10xf32, #tpu.memory_space<any>> -> memref<4x10x10xf32, #tpu.memory_space<any>>
    %18 = tpu.memref_slice %arg3[%c2_i32_18] : memref<3x!tpu.dma_semaphore, #tpu.memory_space<semaphore_mem>> -> memref<1x!tpu.dma_semaphore, #tpu.memory_space<semaphore_mem>>
    %19 = tpu.memref_squeeze %18 : memref<1x!tpu.dma_semaphore, #tpu.memory_space<semaphore_mem>> -> memref<!tpu.dma_semaphore, #tpu.memory_space<semaphore_mem>>
    tpu.wait_dma2 semaphore(%19 : memref<!tpu.dma_semaphore, #tpu.memory_space<semaphore_mem>>) src(%16 : memref<4x10x10xf32, #tpu.memory_space<any>>) dst(%17 : memref<4x10x10xf32, #tpu.memory_space<any>>)
    return
  }
}

</mosaic_0001>

<llo_original>
// kernel: tpu_custom_call.1
$region0: #{tpu_custom_call.1}
  #allocation0 [shape = 'u32[]', space=smem, size = 0x4, offset = 0x4, fixed_abs, tag = 'smem constant byte address 0x4 - core index']
  #allocation1 [shape = 'u32[144,128]{1,0:T(1,128)}', space=vmem, size = 0x12000, scoped, tag = 'internal scratch']
  #allocation2 [shape = 's32[3]{0}', space=sflag, size = 0xc, scoped, tag = 'scratch operand']
  #allocation3 [shape = 's32[]', space=sflag, size = 0x4, offset = 0, fixed_abs, tag = 'sflag constant byte address 0x0 - dummy sync flag']
  #allocation4 [shape = 's32[]', space=sflag, size = 0x4, offset = 0, fixed_abs, tag = 'sflag constant byte address 0x0 - dummy sync flag']
  #allocation5 [shape = 's32[]', space=sflag, size = 0x4, offset = 0, fixed_abs, tag = 'sflag constant byte address 0x0 - dummy sync flag']
  %s0 = inlined_call_operand.vmem [shape: f32[20,10,10], index: 0, kind: input, shape index: {}]
  %s1 = inlined_call_operand.vmem [shape: f32[50,10,10], index: 1, kind: input, shape index: {}]
  %s2 = inlined_call_operand.vmem [shape: f32[74,10,10], index: 2, kind: output, shape index: {}]
  %s3 = sld [smem:[#allocation0]]
  $region113: #{tpu_custom_call.1} parent=0
    _
  %s5 = ssub.s32 1, %s3
  %s6 = scalar_select 0, %s5, %s3
  %p8 = scmp.lt.u32.totalorder 10, 8
  %p9 = pneg %p8
  // Predicated region
  $region2: #{tpu_custom_call.1} parent=0 // pred_check
    _
  $region3: #{tpu_custom_call.1} parent=0 // pred_check_branch
    %11 = sbr.rel (%p8) target = $region5
  $region4: #{tpu_custom_call.1} parent=0 // pred_region
    %s65 = sand.u32 10, 7
    %p66 = scmp.eq.s32.totalorder %s65, 0
    %p67 = pneg %p66
    // Predicated region
    $region17: #{tpu_custom_call.1} parent=4 // pred_check
      _
    $region18: #{tpu_custom_call.1} parent=4 // pred_check_branch
      %69 = sbr.rel (%p66) target = $region20
    $region19: #{tpu_custom_call.1} parent=4 // pred_region
      %s70 = sand.u32 10, 7
      %s71 = ssub.s32 10, %s70
      %s72 = scalar_lea.vmem %s0, %s71
      %s73 = ssub.s32 10, %s70
      %s74 = scalar_lea.vmem %s2, %s73
      loop: start=0, step=1, limit=1
      $region21: #{tpu_custom_call.1} parent=19 // loop_pre_header
        _
      $region22: #{tpu_custom_call.1} parent=19 // loop_header
        %s76 = sphi 0, %s80
        %p77 = scmp.ge.s32.totalorder %s76, 1
        %s81 = sphi %s0, %s0
        %s82 = sphi %s2, %s2
      $region23: #{tpu_custom_call.1} parent=19 // loop_header_branch
        %79 = sbr.rel (%p77) target = $region27
      $region24: #{tpu_custom_call.1} parent=19 // loop_body
        %v83 = vld [vmem:[%s81] sm:$0xff]
        %84 = vst [vmem:[%s82] sm:$0xff] %v83
        %v85 = vld [vmem:[%s81 + $0x10] sm:$0xff]
        %86 = vst [vmem:[%s82 + $0x10] sm:$0xff] %v85
        %v87 = vld [vmem:[%s81 + $0x20] sm:$0xff]
        %88 = vst [vmem:[%s82 + $0x20] sm:$0xff] %v87
        %v89 = vld [vmem:[%s81 + $0x30] sm:$0xff]
        %90 = vst [vmem:[%s82 + $0x30] sm:$0xff] %v89
        %v91 = vld [vmem:[%s81 + $0x40] sm:$0xff]
        %92 = vst [vmem:[%s82 + $0x40] sm:$0xff] %v91
        %v93 = vld [vmem:[%s81 + $0x50] sm:$0xff]
        %94 = vst [vmem:[%s82 + $0x50] sm:$0xff] %v93
        %v95 = vld [vmem:[%s81 + $0x60] sm:$0xff]
        %96 = vst [vmem:[%s82 + $0x60] sm:$0xff] %v95
        %v97 = vld [vmem:[%s81 + $0x70] sm:$0xff]
        %98 = vst [vmem:[%s82 + $0x70] sm:$0xff] %v97
        %v99 = vld [vmem:[%s81 + $0x80] sm:$0xff]
        %100 = vst [vmem:[%s82 + $0x80] sm:$0xff] %v99
        %v101 = vld [vmem:[%s81 + $0x90] sm:$0xff]
        %102 = vst [vmem:[%s82 + $0x90] sm:$0xff] %v101
        %v103 = vld [vmem:[%s81 + $0xa0] sm:$0xff]
        %104 = vst [vmem:[%s82 + $0xa0] sm:$0xff] %v103
        %v105 = vld [vmem:[%s81 + $0xb0] sm:$0xff]
        %106 = vst [vmem:[%s82 + $0xb0] sm:$0xff] %v105
        %v107 = vld [vmem:[%s81 + $0xc0] sm:$0xff]
        %108 = vst [vmem:[%s82 + $0xc0] sm:$0xff] %v107
        %v109 = vld [vmem:[%s81 + $0xd0] sm:$0xff]
        %110 = vst [vmem:[%s82 + $0xd0] sm:$0xff] %v109
        %v111 = vld [vmem:[%s81 + $0xe0] sm:$0xff]
        %112 = vst [vmem:[%s82 + $0xe0] sm:$0xff] %v111
        %v113 = vld [vmem:[%s81 + $0xf0] sm:$0xff]
        %114 = vst [vmem:[%s82 + $0xf0] sm:$0xff] %v113
        %v115 = vld [vmem:[%s81 + $0x100] sm:$0xff]
        %116 = vst [vmem:[%s82 + $0x100] sm:$0xff] %v115
        %v117 = vld [vmem:[%s81 + $0x110] sm:$0xff]
        %118 = vst [vmem:[%s82 + $0x110] sm:$0xff] %v117
        %v119 = vld [vmem:[%s81 + $0x120] sm:$0xff]
        %120 = vst [vmem:[%s82 + $0x120] sm:$0xff] %v119
        %v121 = vld [vmem:[%s81 + $0x130] sm:$0xff]
        %122 = vst [vmem:[%s82 + $0x130] sm:$0xff] %v121
      $region25: #{tpu_custom_call.1} parent=19 // loop_footer
        %s80 = sadd.s32 1, %s76
      $region26: #{tpu_custom_call.1} parent=19 // loop_footer_branch
        %75 = sbr.rel target = $region22
      $region27: #{tpu_custom_call.1} parent=19 // loop_exit
        _
      %s123 = sshll.u32 1, %s70
      %s124 = ssub.s32 %s123, 1
      loop: start=0, step=1, limit=1
      $region28: #{tpu_custom_call.1} parent=19 // loop_pre_header
        _
      $region29: #{tpu_custom_call.1} parent=19 // loop_header
        %s126 = sphi 0, %s130
        %p127 = scmp.ge.s32.totalorder %s126, 1
        %s131 = sphi %s72, %s72
        %s132 = sphi %s74, %s74
      $region30: #{tpu_custom_call.1} parent=19 // loop_header_branch
        %129 = sbr.rel (%p127) target = $region34
      $region31: #{tpu_custom_call.1} parent=19 // loop_body
        %v133 = vld [vmem:[%s131] sm:%s124]
        %134 = vst [vmem:[%s132] sm:%s124] %v133
        %v135 = vld [vmem:[%s131 + $0x10] sm:%s124]
        %136 = vst [vmem:[%s132 + $0x10] sm:%s124] %v135
        %v137 = vld [vmem:[%s131 + $0x20] sm:%s124]
        %138 = vst [vmem:[%s132 + $0x20] sm:%s124] %v137
        %v139 = vld [vmem:[%s131 + $0x30] sm:%s124]
        %140 = vst [vmem:[%s132 + $0x30] sm:%s124] %v139
        %v141 = vld [vmem:[%s131 + $0x40] sm:%s124]
        %142 = vst [vmem:[%s132 + $0x40] sm:%s124] %v141
        %v143 = vld [vmem:[%s131 + $0x50] sm:%s124]
        %144 = vst [vmem:[%s132 + $0x50] sm:%s124] %v143
        %v145 = vld [vmem:[%s131 + $0x60] sm:%s124]
        %146 = vst [vmem:[%s132 + $0x60] sm:%s124] %v145
        %v147 = vld [vmem:[%s131 + $0x70] sm:%s124]
        %148 = vst [vmem:[%s132 + $0x70] sm:%s124] %v147
        %v149 = vld [vmem:[%s131 + $0x80] sm:%s124]
        %150 = vst [vmem:[%s132 + $0x80] sm:%s124] %v149
        %v151 = vld [vmem:[%s131 + $0x90] sm:%s124]
        %152 = vst [vmem:[%s132 + $0x90] sm:%s124] %v151
        %v153 = vld [vmem:[%s131 + $0xa0] sm:%s124]
        %154 = vst [vmem:[%s132 + $0xa0] sm:%s124] %v153
        %v155 = vld [vmem:[%s131 + $0xb0] sm:%s124]
        %156 = vst [vmem:[%s132 + $0xb0] sm:%s124] %v155
        %v157 = vld [vmem:[%s131 + $0xc0] sm:%s124]
        %158 = vst [vmem:[%s132 + $0xc0] sm:%s124] %v157
        %v159 = vld [vmem:[%s131 + $0xd0] sm:%s124]
        %160 = vst [vmem:[%s132 + $0xd0] sm:%s124] %v159
        %v161 = vld [vmem:[%s131 + $0xe0] sm:%s124]
        %162 = vst [vmem:[%s132 + $0xe0] sm:%s124] %v161
        %v163 = vld [vmem:[%s131 + $0xf0] sm:%s124]
        %164 = vst [vmem:[%s132 + $0xf0] sm:%s124] %v163
        %v165 = vld [vmem:[%s131 + $0x100] sm:%s124]
        %166 = vst [vmem:[%s132 + $0x100] sm:%s124] %v165
        %v167 = vld [vmem:[%s131 + $0x110] sm:%s124]
        %168 = vst [vmem:[%s132 + $0x110] sm:%s124] %v167
        %v169 = vld [vmem:[%s131 + $0x120] sm:%s124]
        %170 = vst [vmem:[%s132 + $0x120] sm:%s124] %v169
        %v171 = vld [vmem:[%s131 + $0x130] sm:%s124]
        %172 = vst [vmem:[%s132 + $0x130] sm:%s124] %v171
      $region32: #{tpu_custom_call.1} parent=19 // loop_footer
        %s130 = sadd.s32 1, %s126
      $region33: #{tpu_custom_call.1} parent=19 // loop_footer_branch
        %125 = sbr.rel target = $region29
      $region34: #{tpu_custom_call.1} parent=19 // loop_exit
        _
    $region20: #{tpu_custom_call.1} parent=4 // pred_fallthru
      _
  $region5: #{tpu_custom_call.1} parent=0 // pred_fallthru
    _
  // Predicated region
  $region6: #{tpu_custom_call.1} parent=0 // pred_check
    %p12 = pneg %p8
  $region7: #{tpu_custom_call.1} parent=0 // pred_check_branch
    %14 = sbr.rel (%p12) target = $region9
  $region8: #{tpu_custom_call.1} parent=0 // pred_region
    %s15 = sshll.u32 1, 10
    %s16 = ssub.s32 %s15, 1
    loop: start=0, step=1, limit=1
    $region10: #{tpu_custom_call.1} parent=8 // loop_pre_header
      _
    $region11: #{tpu_custom_call.1} parent=8 // loop_header
      %s18 = sphi 0, %s22
      %p19 = scmp.ge.s32.totalorder %s18, 1
      %s23 = sphi %s0, %s0
      %s24 = sphi %s2, %s2
    $region12: #{tpu_custom_call.1} parent=8 // loop_header_branch
      %21 = sbr.rel (%p19) target = $region16
    $region13: #{tpu_custom_call.1} parent=8 // loop_body
      %v25 = vld [vmem:[%s23] sm:%s16]
      %26 = vst [vmem:[%s24] sm:%s16] %v25
      %v27 = vld [vmem:[%s23 + $0x10] sm:%s16]
      %28 = vst [vmem:[%s24 + $0x10] sm:%s16] %v27
      %v29 = vld [vmem:[%s23 + $0x20] sm:%s16]
      %30 = vst [vmem:[%s24 + $0x20] sm:%s16] %v29
      %v31 = vld [vmem:[%s23 + $0x30] sm:%s16]
      %32 = vst [vmem:[%s24 + $0x30] sm:%s16] %v31
      %v33 = vld [vmem:[%s23 + $0x40] sm:%s16]
      %34 = vst [vmem:[%s24 + $0x40] sm:%s16] %v33
      %v35 = vld [vmem:[%s23 + $0x50] sm:%s16]
      %36 = vst [vmem:[%s24 + $0x50] sm:%s16] %v35
      %v37 = vld [vmem:[%s23 + $0x60] sm:%s16]
      %38 = vst [vmem:[%s24 + $0x60] sm:%s16] %v37
      %v39 = vld [vmem:[%s23 + $0x70] sm:%s16]
      %40 = vst [vmem:[%s24 + $0x70] sm:%s16] %v39
      %v41 = vld [vmem:[%s23 + $0x80] sm:%s16]
      %42 = vst [vmem:[%s24 + $0x80] sm:%s16] %v41
      %v43 = vld [vmem:[%s23 + $0x90] sm:%s16]
      %44 = vst [vmem:[%s24 + $0x90] sm:%s16] %v43
      %v45 = vld [vmem:[%s23 + $0xa0] sm:%s16]
      %46 = vst [vmem:[%s24 + $0xa0] sm:%s16] %v45
      %v47 = vld [vmem:[%s23 + $0xb0] sm:%s16]
      %48 = vst [vmem:[%s24 + $0xb0] sm:%s16] %v47
      %v49 = vld [vmem:[%s23 + $0xc0] sm:%s16]
      %50 = vst [vmem:[%s24 + $0xc0] sm:%s16] %v49
      %v51 = vld [vmem:[%s23 + $0xd0] sm:%s16]
      %52 = vst [vmem:[%s24 + $0xd0] sm:%s16] %v51
      %v53 = vld [vmem:[%s23 + $0xe0] sm:%s16]
      %54 = vst [vmem:[%s24 + $0xe0] sm:%s16] %v53
      %v55 = vld [vmem:[%s23 + $0xf0] sm:%s16]
      %56 = vst [vmem:[%s24 + $0xf0] sm:%s16] %v55
      %v57 = vld [vmem:[%s23 + $0x100] sm:%s16]
      %58 = vst [vmem:[%s24 + $0x100] sm:%s16] %v57
      %v59 = vld [vmem:[%s23 + $0x110] sm:%s16]
      %60 = vst [vmem:[%s24 + $0x110] sm:%s16] %v59
      %v61 = vld [vmem:[%s23 + $0x120] sm:%s16]
      %62 = vst [vmem:[%s24 + $0x120] sm:%s16] %v61
      %v63 = vld [vmem:[%s23 + $0x130] sm:%s16]
      %64 = vst [vmem:[%s24 + $0x130] sm:%s16] %v63
    $region14: #{tpu_custom_call.1} parent=8 // loop_footer
      %s22 = sadd.s32 1, %s18
    $region15: #{tpu_custom_call.1} parent=8 // loop_footer_branch
      %17 = sbr.rel target = $region11
    $region16: #{tpu_custom_call.1} parent=8 // loop_exit
      _
  $region9: #{tpu_custom_call.1} parent=0 // pred_fallthru
    _
  // Predicated region
  $region35: #{tpu_custom_call.1} parent=0 // pred_check
    _
  $region36: #{tpu_custom_call.1} parent=0 // pred_check_branch
    %175 = sbr.rel (0) target = $region38
  $region37: #{tpu_custom_call.1} parent=0 // pred_region
    %176 = vsyncadd [#allocation2], 3200
  $region38: #{tpu_custom_call.1} parent=0 // pred_fallthru
    _
  %s177 = scalar_lea.vmem %s2, 320
  %s178 = scalar_lea.sflag [#allocation2], 1
  %p180 = scmp.lt.u32.totalorder 10, 8
  %p181 = pneg %p180
  // Predicated region
  $region39: #{tpu_custom_call.1} parent=0 // pred_check
    _
  $region40: #{tpu_custom_call.1} parent=0 // pred_check_branch
    %183 = sbr.rel (%p180) target = $region42
  $region41: #{tpu_custom_call.1} parent=0 // pred_region
    %s297 = sand.u32 10, 7
    %p298 = scmp.eq.s32.totalorder %s297, 0
    %p299 = pneg %p298
    // Predicated region
    $region54: #{tpu_custom_call.1} parent=41 // pred_check
      _
    $region55: #{tpu_custom_call.1} parent=41 // pred_check_branch
      %301 = sbr.rel (%p298) target = $region57
    $region56: #{tpu_custom_call.1} parent=41 // pred_region
      %s302 = sand.u32 10, 7
      %s303 = ssub.s32 10, %s302
      %s304 = scalar_lea.vmem %s1, %s303
      %s305 = ssub.s32 10, %s302
      %s306 = scalar_lea.vmem %s177, %s305
      loop: start=0, step=1, limit=1
      $region58: #{tpu_custom_call.1} parent=56 // loop_pre_header
        _
      $region59: #{tpu_custom_call.1} parent=56 // loop_header
        %s308 = sphi 0, %s312
        %p309 = scmp.ge.s32.totalorder %s308, 1
        %s313 = sphi %s1, %s1
        %s314 = sphi %s177, %s177
      $region60: #{tpu_custom_call.1} parent=56 // loop_header_branch
        %311 = sbr.rel (%p309) target = $region64
      $region61: #{tpu_custom_call.1} parent=56 // loop_body
        %v315 = vld [vmem:[%s313] sm:$0xff]
        %316 = vst [vmem:[%s314] sm:$0xff] %v315
        %v317 = vld [vmem:[%s313 + $0x10] sm:$0xff]
        %318 = vst [vmem:[%s314 + $0x10] sm:$0xff] %v317
        %v319 = vld [vmem:[%s313 + $0x20] sm:$0xff]
        %320 = vst [vmem:[%s314 + $0x20] sm:$0xff] %v319
        %v321 = vld [vmem:[%s313 + $0x30] sm:$0xff]
        %322 = vst [vmem:[%s314 + $0x30] sm:$0xff] %v321
        %v323 = vld [vmem:[%s313 + $0x40] sm:$0xff]
        %324 = vst [vmem:[%s314 + $0x40] sm:$0xff] %v323
        %v325 = vld [vmem:[%s313 + $0x50] sm:$0xff]
        %326 = vst [vmem:[%s314 + $0x50] sm:$0xff] %v325
        %v327 = vld [vmem:[%s313 + $0x60] sm:$0xff]
        %328 = vst [vmem:[%s314 + $0x60] sm:$0xff] %v327
        %v329 = vld [vmem:[%s313 + $0x70] sm:$0xff]
        %330 = vst [vmem:[%s314 + $0x70] sm:$0xff] %v329
        %v331 = vld [vmem:[%s313 + $0x80] sm:$0xff]
        %332 = vst [vmem:[%s314 + $0x80] sm:$0xff] %v331
        %v333 = vld [vmem:[%s313 + $0x90] sm:$0xff]
        %334 = vst [vmem:[%s314 + $0x90] sm:$0xff] %v333
        %v335 = vld [vmem:[%s313 + $0xa0] sm:$0xff]
        %336 = vst [vmem:[%s314 + $0xa0] sm:$0xff] %v335
        %v337 = vld [vmem:[%s313 + $0xb0] sm:$0xff]
        %338 = vst [vmem:[%s314 + $0xb0] sm:$0xff] %v337
        %v339 = vld [vmem:[%s313 + $0xc0] sm:$0xff]
        %340 = vst [vmem:[%s314 + $0xc0] sm:$0xff] %v339
        %v341 = vld [vmem:[%s313 + $0xd0] sm:$0xff]
        %342 = vst [vmem:[%s314 + $0xd0] sm:$0xff] %v341
        %v343 = vld [vmem:[%s313 + $0xe0] sm:$0xff]
        %344 = vst [vmem:[%s314 + $0xe0] sm:$0xff] %v343
        %v345 = vld [vmem:[%s313 + $0xf0] sm:$0xff]
        %346 = vst [vmem:[%s314 + $0xf0] sm:$0xff] %v345
        %v347 = vld [vmem:[%s313 + $0x100] sm:$0xff]
        %348 = vst [vmem:[%s314 + $0x100] sm:$0xff] %v347
        %v349 = vld [vmem:[%s313 + $0x110] sm:$0xff]
        %350 = vst [vmem:[%s314 + $0x110] sm:$0xff] %v349
        %v351 = vld [vmem:[%s313 + $0x120] sm:$0xff]
        %352 = vst [vmem:[%s314 + $0x120] sm:$0xff] %v351
        %v353 = vld [vmem:[%s313 + $0x130] sm:$0xff]
        %354 = vst [vmem:[%s314 + $0x130] sm:$0xff] %v353
        %v355 = vld [vmem:[%s313 + $0x140] sm:$0xff]
        %356 = vst [vmem:[%s314 + $0x140] sm:$0xff] %v355
        %v357 = vld [vmem:[%s313 + $0x150] sm:$0xff]
        %358 = vst [vmem:[%s314 + $0x150] sm:$0xff] %v357
        %v359 = vld [vmem:[%s313 + $0x160] sm:$0xff]
        %360 = vst [vmem:[%s314 + $0x160] sm:$0xff] %v359
        %v361 = vld [vmem:[%s313 + $0x170] sm:$0xff]
        %362 = vst [vmem:[%s314 + $0x170] sm:$0xff] %v361
        %v363 = vld [vmem:[%s313 + $0x180] sm:$0xff]
        %364 = vst [vmem:[%s314 + $0x180] sm:$0xff] %v363
        %v365 = vld [vmem:[%s313 + $0x190] sm:$0xff]
        %366 = vst [vmem:[%s314 + $0x190] sm:$0xff] %v365
        %v367 = vld [vmem:[%s313 + $0x1a0] sm:$0xff]
        %368 = vst [vmem:[%s314 + $0x1a0] sm:$0xff] %v367
        %v369 = vld [vmem:[%s313 + $0x1b0] sm:$0xff]
        %370 = vst [vmem:[%s314 + $0x1b0] sm:$0xff] %v369
        %v371 = vld [vmem:[%s313 + $0x1c0] sm:$0xff]
        %372 = vst [vmem:[%s314 + $0x1c0] sm:$0xff] %v371
        %v373 = vld [vmem:[%s313 + $0x1d0] sm:$0xff]
        %374 = vst [vmem:[%s314 + $0x1d0] sm:$0xff] %v373
        %v375 = vld [vmem:[%s313 + $0x1e0] sm:$0xff]
        %376 = vst [vmem:[%s314 + $0x1e0] sm:$0xff] %v375
        %v377 = vld [vmem:[%s313 + $0x1f0] sm:$0xff]
        %378 = vst [vmem:[%s314 + $0x1f0] sm:$0xff] %v377
        %v379 = vld [vmem:[%s313 + $0x200] sm:$0xff]
        %380 = vst [vmem:[%s314 + $0x200] sm:$0xff] %v379
        %v381 = vld [vmem:[%s313 + $0x210] sm:$0xff]
        %382 = vst [vmem:[%s314 + $0x210] sm:$0xff] %v381
        %v383 = vld [vmem:[%s313 + $0x220] sm:$0xff]
        %384 = vst [vmem:[%s314 + $0x220] sm:$0xff] %v383
        %v385 = vld [vmem:[%s313 + $0x230] sm:$0xff]
        %386 = vst [vmem:[%s314 + $0x230] sm:$0xff] %v385
        %v387 = vld [vmem:[%s313 + $0x240] sm:$0xff]
        %388 = vst [vmem:[%s314 + $0x240] sm:$0xff] %v387
        %v389 = vld [vmem:[%s313 + $0x250] sm:$0xff]
        %390 = vst [vmem:[%s314 + $0x250] sm:$0xff] %v389
        %v391 = vld [vmem:[%s313 + $0x260] sm:$0xff]
        %392 = vst [vmem:[%s314 + $0x260] sm:$0xff] %v391
        %v393 = vld [vmem:[%s313 + $0x270] sm:$0xff]
        %394 = vst [vmem:[%s314 + $0x270] sm:$0xff] %v393
        %v395 = vld [vmem:[%s313 + $0x280] sm:$0xff]
        %396 = vst [vmem:[%s314 + $0x280] sm:$0xff] %v395
        %v397 = vld [vmem:[%s313 + $0x290] sm:$0xff]
        %398 = vst [vmem:[%s314 + $0x290] sm:$0xff] %v397
        %v399 = vld [vmem:[%s313 + $0x2a0] sm:$0xff]
        %400 = vst [vmem:[%s314 + $0x2a0] sm:$0xff] %v399
        %v401 = vld [vmem:[%s313 + $0x2b0] sm:$0xff]
        %402 = vst [vmem:[%s314 + $0x2b0] sm:$0xff] %v401
        %v403 = vld [vmem:[%s313 + $0x2c0] sm:$0xff]
        %404 = vst [vmem:[%s314 + $0x2c0] sm:$0xff] %v403
        %v405 = vld [vmem:[%s313 + $0x2d0] sm:$0xff]
        %406 = vst [vmem:[%s314 + $0x2d0] sm:$0xff] %v405
        %v407 = vld [vmem:[%s313 + $0x2e0] sm:$0xff]
        %408 = vst [vmem:[%s314 + $0x2e0] sm:$0xff] %v407
        %v409 = vld [vmem:[%s313 + $0x2f0] sm:$0xff]
        %410 = vst [vmem:[%s314 + $0x2f0] sm:$0xff] %v409
        %v411 = vld [vmem:[%s313 + $0x300] sm:$0xff]
        %412 = vst [vmem:[%s314 + $0x300] sm:$0xff] %v411
        %v413 = vld [vmem:[%s313 + $0x310] sm:$0xff]
        %414 = vst [vmem:[%s314 + $0x310] sm:$0xff] %v413
      $region62: #{tpu_custom_call.1} parent=56 // loop_footer
        %s312 = sadd.s32 1, %s308
      $region63: #{tpu_custom_call.1} parent=56 // loop_footer_branch
        %307 = sbr.rel target = $region59
      $region64: #{tpu_custom_call.1} parent=56 // loop_exit
        _
      %s415 = sshll.u32 1, %s302
      %s416 = ssub.s32 %s415, 1
      loop: start=0, step=1, limit=1
      $region65: #{tpu_custom_call.1} parent=56 // loop_pre_header
        _
      $region66: #{tpu_custom_call.1} parent=56 // loop_header
        %s418 = sphi 0, %s422
        %p419 = scmp.ge.s32.totalorder %s418, 1
        %s423 = sphi %s304, %s304
        %s424 = sphi %s306, %s306
      $region67: #{tpu_custom_call.1} parent=56 // loop_header_branch
        %421 = sbr.rel (%p419) target = $region71
      $region68: #{tpu_custom_call.1} parent=56 // loop_body
        %v425 = vld [vmem:[%s423] sm:%s416]
        %426 = vst [vmem:[%s424] sm:%s416] %v425
        %v427 = vld [vmem:[%s423 + $0x10] sm:%s416]
        %428 = vst [vmem:[%s424 + $0x10] sm:%s416] %v427
        %v429 = vld [vmem:[%s423 + $0x20] sm:%s416]
        %430 = vst [vmem:[%s424 + $0x20] sm:%s416] %v429
        %v431 = vld [vmem:[%s423 + $0x30] sm:%s416]
        %432 = vst [vmem:[%s424 + $0x30] sm:%s416] %v431
        %v433 = vld [vmem:[%s423 + $0x40] sm:%s416]
        %434 = vst [vmem:[%s424 + $0x40] sm:%s416] %v433
        %v435 = vld [vmem:[%s423 + $0x50] sm:%s416]
        %436 = vst [vmem:[%s424 + $0x50] sm:%s416] %v435
        %v437 = vld [vmem:[%s423 + $0x60] sm:%s416]
        %438 = vst [vmem:[%s424 + $0x60] sm:%s416] %v437
        %v439 = vld [vmem:[%s423 + $0x70] sm:%s416]
        %440 = vst [vmem:[%s424 + $0x70] sm:%s416] %v439
        %v441 = vld [vmem:[%s423 + $0x80] sm:%s416]
        %442 = vst [vmem:[%s424 + $0x80] sm:%s416] %v441
        %v443 = vld [vmem:[%s423 + $0x90] sm:%s416]
        %444 = vst [vmem:[%s424 + $0x90] sm:%s416] %v443
        %v445 = vld [vmem:[%s423 + $0xa0] sm:%s416]
        %446 = vst [vmem:[%s424 + $0xa0] sm:%s416] %v445
        %v447 = vld [vmem:[%s423 + $0xb0] sm:%s416]
        %448 = vst [vmem:[%s424 + $0xb0] sm:%s416] %v447
        %v449 = vld [vmem:[%s423 + $0xc0] sm:%s416]
        %450 = vst [vmem:[%s424 + $0xc0] sm:%s416] %v449
        %v451 = vld [vmem:[%s423 + $0xd0] sm:%s416]
        %452 = vst [vmem:[%s424 + $0xd0] sm:%s416] %v451
        %v453 = vld [vmem:[%s423 + $0xe0] sm:%s416]
        %454 = vst [vmem:[%s424 + $0xe0] sm:%s416] %v453
        %v455 = vld [vmem:[%s423 + $0xf0] sm:%s416]
        %456 = vst [vmem:[%s424 + $0xf0] sm:%s416] %v455
        %v457 = vld [vmem:[%s423 + $0x100] sm:%s416]
        %458 = vst [vmem:[%s424 + $0x100] sm:%s416] %v457
        %v459 = vld [vmem:[%s423 + $0x110] sm:%s416]
        %460 = vst [vmem:[%s424 + $0x110] sm:%s416] %v459
        %v461 = vld [vmem:[%s423 + $0x120] sm:%s416]
        %462 = vst [vmem:[%s424 + $0x120] sm:%s416] %v461
        %v463 = vld [vmem:[%s423 + $0x130] sm:%s416]
        %464 = vst [vmem:[%s424 + $0x130] sm:%s416] %v463
        %v465 = vld [vmem:[%s423 + $0x140] sm:%s416]
        %466 = vst [vmem:[%s424 + $0x140] sm:%s416] %v465
        %v467 = vld [vmem:[%s423 + $0x150] sm:%s416]
        %468 = vst [vmem:[%s424 + $0x150] sm:%s416] %v467
        %v469 = vld [vmem:[%s423 + $0x160] sm:%s416]
        %470 = vst [vmem:[%s424 + $0x160] sm:%s416] %v469
        %v471 = vld [vmem:[%s423 + $0x170] sm:%s416]
        %472 = vst [vmem:[%s424 + $0x170] sm:%s416] %v471
        %v473 = vld [vmem:[%s423 + $0x180] sm:%s416]
        %474 = vst [vmem:[%s424 + $0x180] sm:%s416] %v473
        %v475 = vld [vmem:[%s423 + $0x190] sm:%s416]
        %476 = vst [vmem:[%s424 + $0x190] sm:%s416] %v475
        %v477 = vld [vmem:[%s423 + $0x1a0] sm:%s416]
        %478 = vst [vmem:[%s424 + $0x1a0] sm:%s416] %v477
        %v479 = vld [vmem:[%s423 + $0x1b0] sm:%s416]
        %480 = vst [vmem:[%s424 + $0x1b0] sm:%s416] %v479
        %v481 = vld [vmem:[%s423 + $0x1c0] sm:%s416]
        %482 = vst [vmem:[%s424 + $0x1c0] sm:%s416] %v481
        %v483 = vld [vmem:[%s423 + $0x1d0] sm:%s416]
        %484 = vst [vmem:[%s424 + $0x1d0] sm:%s416] %v483
        %v485 = vld [vmem:[%s423 + $0x1e0] sm:%s416]
        %486 = vst [vmem:[%s424 + $0x1e0] sm:%s416] %v485
        %v487 = vld [vmem:[%s423 + $0x1f0] sm:%s416]
        %488 = vst [vmem:[%s424 + $0x1f0] sm:%s416] %v487
        %v489 = vld [vmem:[%s423 + $0x200] sm:%s416]
        %490 = vst [vmem:[%s424 + $0x200] sm:%s416] %v489
        %v491 = vld [vmem:[%s423 + $0x210] sm:%s416]
        %492 = vst [vmem:[%s424 + $0x210] sm:%s416] %v491
        %v493 = vld [vmem:[%s423 + $0x220] sm:%s416]
        %494 = vst [vmem:[%s424 + $0x220] sm:%s416] %v493
        %v495 = vld [vmem:[%s423 + $0x230] sm:%s416]
        %496 = vst [vmem:[%s424 + $0x230] sm:%s416] %v495
        %v497 = vld [vmem:[%s423 + $0x240] sm:%s416]
        %498 = vst [vmem:[%s424 + $0x240] sm:%s416] %v497
        %v499 = vld [vmem:[%s423 + $0x250] sm:%s416]
        %500 = vst [vmem:[%s424 + $0x250] sm:%s416] %v499
        %v501 = vld [vmem:[%s423 + $0x260] sm:%s416]
        %502 = vst [vmem:[%s424 + $0x260] sm:%s416] %v501
        %v503 = vld [vmem:[%s423 + $0x270] sm:%s416]
        %504 = vst [vmem:[%s424 + $0x270] sm:%s416] %v503
        %v505 = vld [vmem:[%s423 + $0x280] sm:%s416]
        %506 = vst [vmem:[%s424 + $0x280] sm:%s416] %v505
        %v507 = vld [vmem:[%s423 + $0x290] sm:%s416]
        %508 = vst [vmem:[%s424 + $0x290] sm:%s416] %v507
        %v509 = vld [vmem:[%s423 + $0x2a0] sm:%s416]
        %510 = vst [vmem:[%s424 + $0x2a0] sm:%s416] %v509
        %v511 = vld [vmem:[%s423 + $0x2b0] sm:%s416]
        %512 = vst [vmem:[%s424 + $0x2b0] sm:%s416] %v511
        %v513 = vld [vmem:[%s423 + $0x2c0] sm:%s416]
        %514 = vst [vmem:[%s424 + $0x2c0] sm:%s416] %v513
        %v515 = vld [vmem:[%s423 + $0x2d0] sm:%s416]
        %516 = vst [vmem:[%s424 + $0x2d0] sm:%s416] %v515
        %v517 = vld [vmem:[%s423 + $0x2e0] sm:%s416]
        %518 = vst [vmem:[%s424 + $0x2e0] sm:%s416] %v517
        %v519 = vld [vmem:[%s423 + $0x2f0] sm:%s416]
        %520 = vst [vmem:[%s424 + $0x2f0] sm:%s416] %v519
        %v521 = vld [vmem:[%s423 + $0x300] sm:%s416]
        %522 = vst [vmem:[%s424 + $0x300] sm:%s416] %v521
        %v523 = vld [vmem:[%s423 + $0x310] sm:%s416]
        %524 = vst [vmem:[%s424 + $0x310] sm:%s416] %v523
      $region69: #{tpu_custom_call.1} parent=56 // loop_footer
        %s422 = sadd.s32 1, %s418
      $region70: #{tpu_custom_call.1} parent=56 // loop_footer_branch
        %417 = sbr.rel target = $region66
      $region71: #{tpu_custom_call.1} parent=56 // loop_exit
        _
    $region57: #{tpu_custom_call.1} parent=41 // pred_fallthru
      _
  $region42: #{tpu_custom_call.1} parent=0 // pred_fallthru
    _
  // Predicated region
  $region43: #{tpu_custom_call.1} parent=0 // pred_check
    %p184 = pneg %p180
  $region44: #{tpu_custom_call.1} parent=0 // pred_check_branch
    %186 = sbr.rel (%p184) target = $region46
  $region45: #{tpu_custom_call.1} parent=0 // pred_region
    %s187 = sshll.u32 1, 10
    %s188 = ssub.s32 %s187, 1
    loop: start=0, step=1, limit=1
    $region47: #{tpu_custom_call.1} parent=45 // loop_pre_header
      _
    $region48: #{tpu_custom_call.1} parent=45 // loop_header
      %s190 = sphi 0, %s194
      %p191 = scmp.ge.s32.totalorder %s190, 1
      %s195 = sphi %s1, %s1
      %s196 = sphi %s177, %s177
    $region49: #{tpu_custom_call.1} parent=45 // loop_header_branch
      %193 = sbr.rel (%p191) target = $region53
    $region50: #{tpu_custom_call.1} parent=45 // loop_body
      %v197 = vld [vmem:[%s195] sm:%s188]
      %198 = vst [vmem:[%s196] sm:%s188] %v197
      %v199 = vld [vmem:[%s195 + $0x10] sm:%s188]
      %200 = vst [vmem:[%s196 + $0x10] sm:%s188] %v199
      %v201 = vld [vmem:[%s195 + $0x20] sm:%s188]
      %202 = vst [vmem:[%s196 + $0x20] sm:%s188] %v201
      %v203 = vld [vmem:[%s195 + $0x30] sm:%s188]
      %204 = vst [vmem:[%s196 + $0x30] sm:%s188] %v203
      %v205 = vld [vmem:[%s195 + $0x40] sm:%s188]
      %206 = vst [vmem:[%s196 + $0x40] sm:%s188] %v205
      %v207 = vld [vmem:[%s195 + $0x50] sm:%s188]
      %208 = vst [vmem:[%s196 + $0x50] sm:%s188] %v207
      %v209 = vld [vmem:[%s195 + $0x60] sm:%s188]
      %210 = vst [vmem:[%s196 + $0x60] sm:%s188] %v209
      %v211 = vld [vmem:[%s195 + $0x70] sm:%s188]
      %212 = vst [vmem:[%s196 + $0x70] sm:%s188] %v211
      %v213 = vld [vmem:[%s195 + $0x80] sm:%s188]
      %214 = vst [vmem:[%s196 + $0x80] sm:%s188] %v213
      %v215 = vld [vmem:[%s195 + $0x90] sm:%s188]
      %216 = vst [vmem:[%s196 + $0x90] sm:%s188] %v215
      %v217 = vld [vmem:[%s195 + $0xa0] sm:%s188]
      %218 = vst [vmem:[%s196 + $0xa0] sm:%s188] %v217
      %v219 = vld [vmem:[%s195 + $0xb0] sm:%s188]
      %220 = vst [vmem:[%s196 + $0xb0] sm:%s188] %v219
      %v221 = vld [vmem:[%s195 + $0xc0] sm:%s188]
      %222 = vst [vmem:[%s196 + $0xc0] sm:%s188] %v221
      %v223 = vld [vmem:[%s195 + $0xd0] sm:%s188]
      %224 = vst [vmem:[%s196 + $0xd0] sm:%s188] %v223
      %v225 = vld [vmem:[%s195 + $0xe0] sm:%s188]
      %226 = vst [vmem:[%s196 + $0xe0] sm:%s188] %v225
      %v227 = vld [vmem:[%s195 + $0xf0] sm:%s188]
      %228 = vst [vmem:[%s196 + $0xf0] sm:%s188] %v227
      %v229 = vld [vmem:[%s195 + $0x100] sm:%s188]
      %230 = vst [vmem:[%s196 + $0x100] sm:%s188] %v229
      %v231 = vld [vmem:[%s195 + $0x110] sm:%s188]
      %232 = vst [vmem:[%s196 + $0x110] sm:%s188] %v231
      %v233 = vld [vmem:[%s195 + $0x120] sm:%s188]
      %234 = vst [vmem:[%s196 + $0x120] sm:%s188] %v233
      %v235 = vld [vmem:[%s195 + $0x130] sm:%s188]
      %236 = vst [vmem:[%s196 + $0x130] sm:%s188] %v235
      %v237 = vld [vmem:[%s195 + $0x140] sm:%s188]
      %238 = vst [vmem:[%s196 + $0x140] sm:%s188] %v237
      %v239 = vld [vmem:[%s195 + $0x150] sm:%s188]
      %240 = vst [vmem:[%s196 + $0x150] sm:%s188] %v239
      %v241 = vld [vmem:[%s195 + $0x160] sm:%s188]
      %242 = vst [vmem:[%s196 + $0x160] sm:%s188] %v241
      %v243 = vld [vmem:[%s195 + $0x170] sm:%s188]
      %244 = vst [vmem:[%s196 + $0x170] sm:%s188] %v243
      %v245 = vld [vmem:[%s195 + $0x180] sm:%s188]
      %246 = vst [vmem:[%s196 + $0x180] sm:%s188] %v245
      %v247 = vld [vmem:[%s195 + $0x190] sm:%s188]
      %248 = vst [vmem:[%s196 + $0x190] sm:%s188] %v247
      %v249 = vld [vmem:[%s195 + $0x1a0] sm:%s188]
      %250 = vst [vmem:[%s196 + $0x1a0] sm:%s188] %v249
      %v251 = vld [vmem:[%s195 + $0x1b0] sm:%s188]
      %252 = vst [vmem:[%s196 + $0x1b0] sm:%s188] %v251
      %v253 = vld [vmem:[%s195 + $0x1c0] sm:%s188]
      %254 = vst [vmem:[%s196 + $0x1c0] sm:%s188] %v253
      %v255 = vld [vmem:[%s195 + $0x1d0] sm:%s188]
      %256 = vst [vmem:[%s196 + $0x1d0] sm:%s188] %v255
      %v257 = vld [vmem:[%s195 + $0x1e0] sm:%s188]
      %258 = vst [vmem:[%s196 + $0x1e0] sm:%s188] %v257
      %v259 = vld [vmem:[%s195 + $0x1f0] sm:%s188]
      %260 = vst [vmem:[%s196 + $0x1f0] sm:%s188] %v259
      %v261 = vld [vmem:[%s195 + $0x200] sm:%s188]
      %262 = vst [vmem:[%s196 + $0x200] sm:%s188] %v261
      %v263 = vld [vmem:[%s195 + $0x210] sm:%s188]
      %264 = vst [vmem:[%s196 + $0x210] sm:%s188] %v263
      %v265 = vld [vmem:[%s195 + $0x220] sm:%s188]
      %266 = vst [vmem:[%s196 + $0x220] sm:%s188] %v265
      %v267 = vld [vmem:[%s195 + $0x230] sm:%s188]
      %268 = vst [vmem:[%s196 + $0x230] sm:%s188] %v267
      %v269 = vld [vmem:[%s195 + $0x240] sm:%s188]
      %270 = vst [vmem:[%s196 + $0x240] sm:%s188] %v269
      %v271 = vld [vmem:[%s195 + $0x250] sm:%s188]
      %272 = vst [vmem:[%s196 + $0x250] sm:%s188] %v271
      %v273 = vld [vmem:[%s195 + $0x260] sm:%s188]
      %274 = vst [vmem:[%s196 + $0x260] sm:%s188] %v273
      %v275 = vld [vmem:[%s195 + $0x270] sm:%s188]
      %276 = vst [vmem:[%s196 + $0x270] sm:%s188] %v275
      %v277 = vld [vmem:[%s195 + $0x280] sm:%s188]
      %278 = vst [vmem:[%s196 + $0x280] sm:%s188] %v277
      %v279 = vld [vmem:[%s195 + $0x290] sm:%s188]
      %280 = vst [vmem:[%s196 + $0x290] sm:%s188] %v279
      %v281 = vld [vmem:[%s195 + $0x2a0] sm:%s188]
      %282 = vst [vmem:[%s196 + $0x2a0] sm:%s188] %v281
      %v283 = vld [vmem:[%s195 + $0x2b0] sm:%s188]
      %284 = vst [vmem:[%s196 + $0x2b0] sm:%s188] %v283
      %v285 = vld [vmem:[%s195 + $0x2c0] sm:%s188]
      %286 = vst [vmem:[%s196 + $0x2c0] sm:%s188] %v285
      %v287 = vld [vmem:[%s195 + $0x2d0] sm:%s188]
      %288 = vst [vmem:[%s196 + $0x2d0] sm:%s188] %v287
      %v289 = vld [vmem:[%s195 + $0x2e0] sm:%s188]
      %290 = vst [vmem:[%s196 + $0x2e0] sm:%s188] %v289
      %v291 = vld [vmem:[%s195 + $0x2f0] sm:%s188]
      %292 = vst [vmem:[%s196 + $0x2f0] sm:%s188] %v291
      %v293 = vld [vmem:[%s195 + $0x300] sm:%s188]
      %294 = vst [vmem:[%s196 + $0x300] sm:%s188] %v293
      %v295 = vld [vmem:[%s195 + $0x310] sm:%s188]
      %296 = vst [vmem:[%s196 + $0x310] sm:%s188] %v295
    $region51: #{tpu_custom_call.1} parent=45 // loop_footer
      %s194 = sadd.s32 1, %s190
    $region52: #{tpu_custom_call.1} parent=45 // loop_footer_branch
      %189 = sbr.rel target = $region48
    $region53: #{tpu_custom_call.1} parent=45 // loop_exit
      _
  $region46: #{tpu_custom_call.1} parent=0 // pred_fallthru
    _
  // Predicated region
  $region72: #{tpu_custom_call.1} parent=0 // pred_check
    _
  $region73: #{tpu_custom_call.1} parent=0 // pred_check_branch
    %527 = sbr.rel (0) target = $region75
  $region74: #{tpu_custom_call.1} parent=0 // pred_region
    %528 = vsyncadd %s178, 8000
  $region75: #{tpu_custom_call.1} parent=0 // pred_fallthru
    _
  %s529 = scalar_lea.vmem %s2, 1120
  %s530 = scalar_lea.sflag [#allocation2], 2
  %p532 = scmp.lt.u32.totalorder 10, 8
  %p533 = pneg %p532
  // Predicated region
  $region76: #{tpu_custom_call.1} parent=0 // pred_check
    _
  $region77: #{tpu_custom_call.1} parent=0 // pred_check_branch
    %535 = sbr.rel (%p532) target = $region79
  $region78: #{tpu_custom_call.1} parent=0 // pred_region
    %s557 = sand.u32 10, 7
    %p558 = scmp.eq.s32.totalorder %s557, 0
    %p559 = pneg %p558
    // Predicated region
    $region91: #{tpu_custom_call.1} parent=78 // pred_check
      _
    $region92: #{tpu_custom_call.1} parent=78 // pred_check_branch
      %561 = sbr.rel (%p558) target = $region94
    $region93: #{tpu_custom_call.1} parent=78 // pred_region
      %s562 = sand.u32 10, 7
      %s563 = ssub.s32 10, %s562
      %s564 = scalar_lea.vmem %s0, %s563
      %s565 = ssub.s32 10, %s562
      %s566 = scalar_lea.vmem %s529, %s565
      loop: start=0, step=1, limit=1
      $region95: #{tpu_custom_call.1} parent=93 // loop_pre_header
        _
      $region96: #{tpu_custom_call.1} parent=93 // loop_header
        %s568 = sphi 0, %s572
        %p569 = scmp.ge.s32.totalorder %s568, 1
        %s573 = sphi %s0, %s0
        %s574 = sphi %s529, %s529
      $region97: #{tpu_custom_call.1} parent=93 // loop_header_branch
        %571 = sbr.rel (%p569) target = $region101
      $region98: #{tpu_custom_call.1} parent=93 // loop_body
        %v575 = vld [vmem:[%s573] sm:$0xff]
        %576 = vst [vmem:[%s574] sm:$0xff] %v575
        %v577 = vld [vmem:[%s573 + $0x10] sm:$0xff]
        %578 = vst [vmem:[%s574 + $0x10] sm:$0xff] %v577
        %v579 = vld [vmem:[%s573 + $0x20] sm:$0xff]
        %580 = vst [vmem:[%s574 + $0x20] sm:$0xff] %v579
        %v581 = vld [vmem:[%s573 + $0x30] sm:$0xff]
        %582 = vst [vmem:[%s574 + $0x30] sm:$0xff] %v581
      $region99: #{tpu_custom_call.1} parent=93 // loop_footer
        %s572 = sadd.s32 1, %s568
      $region100: #{tpu_custom_call.1} parent=93 // loop_footer_branch
        %567 = sbr.rel target = $region96
      $region101: #{tpu_custom_call.1} parent=93 // loop_exit
        _
      %s583 = sshll.u32 1, %s562
      %s584 = ssub.s32 %s583, 1
      loop: start=0, step=1, limit=1
      $region102: #{tpu_custom_call.1} parent=93 // loop_pre_header
        _
      $region103: #{tpu_custom_call.1} parent=93 // loop_header
        %s586 = sphi 0, %s590
        %p587 = scmp.ge.s32.totalorder %s586, 1
        %s591 = sphi %s564, %s564
        %s592 = sphi %s566, %s566
      $region104: #{tpu_custom_call.1} parent=93 // loop_header_branch
        %589 = sbr.rel (%p587) target = $region108
      $region105: #{tpu_custom_call.1} parent=93 // loop_body
        %v593 = vld [vmem:[%s591] sm:%s584]
        %594 = vst [vmem:[%s592] sm:%s584] %v593
        %v595 = vld [vmem:[%s591 + $0x10] sm:%s584]
        %596 = vst [vmem:[%s592 + $0x10] sm:%s584] %v595
        %v597 = vld [vmem:[%s591 + $0x20] sm:%s584]
        %598 = vst [vmem:[%s592 + $0x20] sm:%s584] %v597
        %v599 = vld [vmem:[%s591 + $0x30] sm:%s584]
        %600 = vst [vmem:[%s592 + $0x30] sm:%s584] %v599
      $region106: #{tpu_custom_call.1} parent=93 // loop_footer
        %s590 = sadd.s32 1, %s586
      $region107: #{tpu_custom_call.1} parent=93 // loop_footer_branch
        %585 = sbr.rel target = $region103
      $region108: #{tpu_custom_call.1} parent=93 // loop_exit
        _
    $region94: #{tpu_custom_call.1} parent=78 // pred_fallthru
      _
  $region79: #{tpu_custom_call.1} parent=0 // pred_fallthru
    _
  // Predicated region
  $region80: #{tpu_custom_call.1} parent=0 // pred_check
    %p536 = pneg %p532
  $region81: #{tpu_custom_call.1} parent=0 // pred_check_branch
    %538 = sbr.rel (%p536) target = $region83
  $region82: #{tpu_custom_call.1} parent=0 // pred_region
    %s539 = sshll.u32 1, 10
    %s540 = ssub.s32 %s539, 1
    loop: start=0, step=1, limit=1
    $region84: #{tpu_custom_call.1} parent=82 // loop_pre_header
      _
    $region85: #{tpu_custom_call.1} parent=82 // loop_header
      %s542 = sphi 0, %s546
      %p543 = scmp.ge.s32.totalorder %s542, 1
      %s547 = sphi %s0, %s0
      %s548 = sphi %s529, %s529
    $region86: #{tpu_custom_call.1} parent=82 // loop_header_branch
      %545 = sbr.rel (%p543) target = $region90
    $region87: #{tpu_custom_call.1} parent=82 // loop_body
      %v549 = vld [vmem:[%s547] sm:%s540]
      %550 = vst [vmem:[%s548] sm:%s540] %v549
      %v551 = vld [vmem:[%s547 + $0x10] sm:%s540]
      %552 = vst [vmem:[%s548 + $0x10] sm:%s540] %v551
      %v553 = vld [vmem:[%s547 + $0x20] sm:%s540]
      %554 = vst [vmem:[%s548 + $0x20] sm:%s540] %v553
      %v555 = vld [vmem:[%s547 + $0x30] sm:%s540]
      %556 = vst [vmem:[%s548 + $0x30] sm:%s540] %v555
    $region88: #{tpu_custom_call.1} parent=82 // loop_footer
      %s546 = sadd.s32 1, %s542
    $region89: #{tpu_custom_call.1} parent=82 // loop_footer_branch
      %541 = sbr.rel target = $region85
    $region90: #{tpu_custom_call.1} parent=82 // loop_exit
      _
  $region83: #{tpu_custom_call.1} parent=0 // pred_fallthru
    _
  // Predicated region
  $region109: #{tpu_custom_call.1} parent=0 // pred_check
    _
  $region110: #{tpu_custom_call.1} parent=0 // pred_check_branch
    %603 = sbr.rel (0) target = $region112
  $region111: #{tpu_custom_call.1} parent=0 // pred_region
    %604 = vsyncadd %s530, 640
  $region112: #{tpu_custom_call.1} parent=0 // pred_fallthru
    _
  %s605 = smul.u32 20, 10
  %s606 = smul.u32 %s605, 1
  %s607 = sshll.u32 %s606, 4
  %608 = dma.done [#allocation2], %s607
  %s609 = smul.u32 50, 10
  %s610 = smul.u32 %s609, 1
  %s611 = sshll.u32 %s610, 4
  %612 = dma.done %s178, %s611
  %s613 = smul.u32 4, 10
  %s614 = smul.u32 %s613, 1
  %s615 = sshll.u32 %s614, 4
  %616 = dma.done %s530, %s615
  %617 = vsyncmov [#allocation2]
  %s618 = vpop.sfrf %617
  %p619 = scmp.eq.s32.totalorder %s618, 0
  %p620 = pneg %p619
  %622 = shalt.err (%p620)
  %s623 = scalar_lea.sflag [#allocation2], 1
  %624 = vsyncmov %s623
  %s625 = vpop.sfrf %624
  %p626 = scmp.eq.s32.totalorder %s625, 0
  %p627 = pneg %p626
  %629 = shalt.err (%p627)
  %s630 = scalar_lea.sflag [#allocation2], 2
  %631 = vsyncmov %s630
  %s632 = vpop.sfrf %631
  %p633 = scmp.eq.s32.totalorder %s632, 0
  %p634 = pneg %p633
  %636 = shalt.err (%p634)

</llo_original>
